<compile_context>
chip_gen: v6e
topology: v6e:2x2x1
jax: 0.10.0
libtpu: 0.0.40
codegen_flags: <defaults>
</compile_context>

<pallas_src>
import jax
import jax.numpy as jnp
from jax.experimental import pallas as pl
from jax.experimental.pallas import tpu as pltpu


LANES = 128                  # TPU lane width (fast axis)
SINGLE_BLOCK_MAX_ROWS = 256  # <=128 KiB payload: single block (latency regime)
MIN_BLOCK_ROWS = 256         # keep per-step DMA >=128 KiB (>> ~0.35us/step)
MAX_BLOCK_ROWS = 8192        # 8192x128 f32 = 4 MiB/buffer (16 MiB dbl-buffered)


def _nnet_kernel(w_ref, b_ref, x_ref, o_ref):
    # w_ref: SMEM (1, 2)  -- Linear weight (out_features=1, in_features=2)
    # b_ref: SMEM (1,)    -- Linear bias
    # x_ref: VMEM (block_rows, 128) tile of the flattened (aligned) input
    # o_ref: VMEM (block_rows, 128) tile of the output
    x = x_ref[...]
    w0 = w_ref[0, 0]
    w1 = w_ref[0, 1]
    b = b_ref[0]
    # y = w0*x + w1*x^2 + b, Horner form x*(w0 + w1*x) + b  (VPU only)
    o_ref[...] = x * (w0 + w1 * x) + b


def _pick_block_rows(rows):
    """Row-block size: single block for small payloads, otherwise ~8 pipelined
    blocks (multiple of 8 sublanes), bounded to [MIN, MAX]_BLOCK_ROWS."""
    if rows <= SINGLE_BLOCK_MAX_ROWS:
        # Full-dim block: legal even when rows % 8 != 0 (block == array dims).
        return rows
    target = pl.cdiv(rows, 8)           # aim for ~8 blocks -> DMA overlap
    target = ((target + 7) // 8) * 8    # sublane multiple
    return max(MIN_BLOCK_ROWS, min(MAX_BLOCK_ROWS, target))


def _dim_semantics(num_blocks):
    """Row-axis semantics: CORE_PARALLEL on v7x (2 TCs/chip) when it exists,
    plain 'parallel' (classic megacore hint) otherwise."""
    if num_blocks < 2:
        return ("arbitrary",)
    try:
        kind = jax.devices()[0].device_kind.lower()
    except Exception:  # pragma: no cover - defensive
        kind = ""
    core_parallel = getattr(pltpu, "CORE_PARALLEL", None)
    if core_parallel is not None and ("v7" in kind or "7x" in kind):
        return (core_parallel,)
    return ("parallel",)


def _poly_pallas(x2d, weight, bias):
    """x2d: (rows, 128) f32 -> (rows, 128) f32 with y = w0*x + w1*x^2 + b."""
    rows = x2d.shape[0]
    block_rows = _pick_block_rows(rows)
    num_blocks = pl.cdiv(rows, block_rows)  # ragged last block handled by Pallas

    return pl.pallas_call(
        _nnet_kernel,
        out_shape=jax.ShapeDtypeStruct((rows, LANES), jnp.float32),
        grid_spec=pltpu.PrefetchScalarGridSpec(
            num_scalar_prefetch=0,
            grid=(num_blocks,),
            in_specs=[
                pl.BlockSpec(memory_space=pltpu.SMEM),  # weight (1, 2)
                pl.BlockSpec(memory_space=pltpu.SMEM),  # bias (1,)
                pl.BlockSpec((block_rows, LANES), lambda i: (i, 0)),
            ],
            out_specs=pl.BlockSpec((block_rows, LANES), lambda i: (i, 0)),
        ),
        compiler_params=pltpu.CompilerParams(
            dimension_semantics=_dim_semantics(num_blocks),
            # 4 x 4 MiB buffers at MAX_BLOCK_ROWS; v5e's default 16 MiB scoped
            # VMEM would be exactly at the edge -> raise explicitly.
            vmem_limit_bytes=32 * 1024 * 1024,
        ),
        cost_estimate=pl.CostEstimate(
            flops=4 * rows * LANES,
            transcendentals=0,
            bytes_accessed=8 * rows * LANES,
        ),
    )(weight, bias, x2d)


def nnet_forward(x, weight, bias):
    """x: (N,) f32, weight: (1, 2) f32, bias: (1,) f32  ->  (N, 1) f32."""
    x = jnp.asarray(x, jnp.float32)
    weight = jnp.asarray(weight, jnp.float32)
    bias = jnp.asarray(bias, jnp.float32)

    n = x.shape[0]
    n_main = (n // LANES) * LANES   # 128-aligned prefix handled by the kernel
    n_tail = n - n_main             # <=127 trailing elements handled by jnp

    parts = []
    if n_main:
        x_main = x if n_tail == 0 else x[:n_main]
        out2d = _poly_pallas(
            x_main.reshape(n_main // LANES, LANES), weight, bias)
        parts.append(out2d.reshape(n_main, 1))   # free, lane-dense -> (N,1)
    if n_tail:
        xt = x[n_main:]
        parts.append(jnp.stack([xt, xt * xt], axis=1) @ weight.T + bias)
    return parts[0] if len(parts) == 1 else jnp.concatenate(parts, axis=0)


if __name__ == "__main__":
    key = jax.random.PRNGKey(0)
    k_idx1, k_idx2, k_w, k_b = jax.random.split(key, 4)

    # prices = np.arange(1, 10, 0.1)
    prices = jnp.arange(1.0, 10.0, 0.1, dtype=jnp.float32)

    # Deterministic init of Linear(2, 1): uniform(-1/sqrt(in), 1/sqrt(in))
    bound = 1.0 / jnp.sqrt(2.0)
    weight = jax.random.uniform(k_w, (1, 2), jnp.float32, -bound, bound)
    bias = jax.random.uniform(k_b, (1,), jnp.float32, -bound, bound)

    def reference(xv):
        powers = jnp.stack([xv, xv * xv], axis=1)   # (N, 2)
        return powers @ weight.T + bias             # (N, 1)

    # Case 1: original usage N=1000 (ragged -> 896 elems via kernel + 104 tail)
    N1 = 1000
    idx1 = jax.random.randint(k_idx1, (N1,), 0, prices.shape[0])
    x1 = prices[idx1]
    out1 = jax.block_until_ready(nnet_forward(x1, weight, bias))
    assert out1.shape == (N1, 1)
    assert jnp.allclose(out1, reference(x1), rtol=1e-5, atol=1e-5)

    # Case 2: lane-aligned, multi-block streaming path (grid=2, ragged last
    # row block) -> exercises the pipelined / megacore-splittable path.
    N2 = 300 * LANES
    idx2 = jax.random.randint(k_idx2, (N2,), 0, prices.shape[0])
    x2 = prices[idx2]
    out2 = jax.block_until_ready(nnet_forward(x2, weight, bias))
    assert out2.shape == (N2, 1)
    assert jnp.allclose(out2, reference(x2), rtol=1e-5, atol=1e-5)

    print("KERNEL_OK")
</pallas_src>

<mosaic_0001>
module attributes {stable_mosaic.version = 11 : i64} {
  func.func @_nnet_kernel(%arg0: i32, %arg1: memref<1x2xf32, #tpu.memory_space<smem>>, %arg2: memref<1xf32, #tpu.memory_space<smem>>, %arg3: memref<7x128xf32, #tpu.memory_space<vmem>>, %arg4: memref<7x128xf32, #tpu.memory_space<vmem>>) attributes {dimension_semantics = [#tpu.dimension_semantics<arbitrary>], iteration_bounds = array<i64: 1>, scalar_prefetch = 0 : i64, scratch_operands = 0 : i64, tpu.core_type = #tpu.core_type<tc>, window_params = [{transform_indices = @transform_0, window_bounds = array<i64: 1, 2>}, {transform_indices = @transform_1, window_bounds = array<i64: 1>}, {transform_indices = @transform_2, window_bounds = array<i64: 7, 128>}, {transform_indices = @transform_3, window_bounds = array<i64: 7, 128>}]} {
    %c0 = arith.constant 0 : index
    %c0_0 = arith.constant 0 : index
    %0 = vector.load %arg3[%c0, %c0_0] : memref<7x128xf32, #tpu.memory_space<vmem>>, vector<7x128xf32>
    %c0_1 = arith.constant 0 : index
    %c0_2 = arith.constant 0 : index
    %1 = memref.load %arg1[%c0_1, %c0_2] : memref<1x2xf32, #tpu.memory_space<smem>>
    %c0_3 = arith.constant 0 : index
    %c1 = arith.constant 1 : index
    %2 = memref.load %arg1[%c0_3, %c1] : memref<1x2xf32, #tpu.memory_space<smem>>
    %c0_4 = arith.constant 0 : index
    %3 = memref.load %arg2[%c0_4] : memref<1xf32, #tpu.memory_space<smem>>
    %4 = vector.broadcast %2 : f32 to vector<7x128xf32>
    %5 = arith.mulf %4, %0 : vector<7x128xf32>
    %6 = vector.broadcast %1 : f32 to vector<7x128xf32>
    %7 = arith.addf %6, %5 : vector<7x128xf32>
    %8 = arith.mulf %0, %7 : vector<7x128xf32>
    %9 = vector.broadcast %3 : f32 to vector<7x128xf32>
    %10 = arith.addf %8, %9 : vector<7x128xf32>
    %c0_5 = arith.constant 0 : index
    %c0_6 = arith.constant 0 : index
    %11 = vector.load %arg4[%c0_5, %c0_6] : memref<7x128xf32, #tpu.memory_space<vmem>>, vector<7x128xf32>
    tpu.vector_store %arg4[%c0_5, %c0_6], %10 {strides = array<i32>} : memref<7x128xf32, #tpu.memory_space<vmem>>, vector<7x128xf32>,
    return
  }
  func.func @transform_0(%arg0: i32) -> (i32, i32) {
    %c0_i32 = arith.constant 0 : i32
    %c0_i32_0 = arith.constant 0 : i32
    %c0_i32_1 = arith.constant 0 : i32
    return %c0_i32, %c0_i32_0 : i32, i32
  }
  func.func @transform_1(%arg0: i32) -> i32 {
    %c0_i32 = arith.constant 0 : i32
    %c0_i32_0 = arith.constant 0 : i32
    return %c0_i32 : i32
  }
  func.func @transform_2(%arg0: i32) -> (i32, i32) {
    %c0_i32 = arith.constant 0 : i32
    %c0_i32_0 = arith.constant 0 : i32
    return %arg0, %c0_i32 : i32, i32
  }
  func.func @transform_3(%arg0: i32) -> (i32, i32) {
    %c0_i32 = arith.constant 0 : i32
    %c0_i32_0 = arith.constant 0 : i32
    return %arg0, %c0_i32 : i32, i32
  }
}

</mosaic_0001>

<llo_original>
// kernel: tpu_custom_call.1
$region0: #{tpu_custom_call.1}
  #allocation0 [shape = 'u32[]', space=smem, size = 0x4, offset = 0x4, fixed_abs, tag = 'smem constant byte address 0x4 - core index']
  #allocation1 [shape = 'u32[144,128]{1,0:T(1,128)}', space=vmem, size = 0x12000, scoped, tag = 'internal scratch']
  #allocation2 [shape = 'f32[1]{0:T(128)S(6)}', space=smem, size = 0x200, scoped, tag = 'scoped memory for tpu_custom_call.1']
  %s0 = inlined_call_operand.vmem [shape: f32[1,2], index: 0, kind: input, shape index: {}]
  %s1 = inlined_call_operand.<no memory space> [shape: f32[1], index: 1, kind: input, shape index: {}]
  %s2 = inlined_call_operand.hbm [shape: f32[7,128], index: 2, kind: input, shape index: {}]
  %s3 = inlined_call_operand.hbm [shape: f32[7,128], index: 3, kind: output, shape index: {}]
  %s4 = sld [smem:[#allocation0]]
  $region30: #{tpu_custom_call.1} parent=0
    _
  %s6 = ssub.s32 1, %s4
  %s7 = scalar_select 0, %s6, %s4
  %8 = sst [smem:[#allocation2]] %s1
  $region1: #{tpu_custom_call.1} parent=0
    #allocation3 [shape = 'u8[512]{0}', space=smem, size = 0x200, scoped, tag = 'input window, operand 0, single buffered']
    #allocation4 [shape = 's32[1]{0}', space=sflag, size = 0x4, scoped, tag = 'scoped memory for tpu_custom_call.1']
    #allocation5 [shape = 's32[1]{0}', space=sflag, size = 0x4, scoped, tag = 'scoped memory for tpu_custom_call.1']
    #allocation6 [shape = 's32[1]{0}', space=sflag, size = 0x4, scoped, tag = 'scoped memory for tpu_custom_call.1']
    #allocation7 [shape = 'u8[4096]{0}', space=vmem, size = 0x1000, scoped, tag = 'input window, operand 2, single buffered']
    #allocation8 [shape = 'u8[4096]{0}', space=vmem, size = 0x1000, scoped, tag = 'output window, operand 0, single buffered']
    %9 = vsyncpa [#allocation6], 0
    %10 = vsyncpa [#allocation4], 0
    %11 = vsyncpa [#allocation5], 0
    // Predicated region
    $region2: #{tpu_custom_call.1} parent=1 // pred_check
      _
    $region3: #{tpu_custom_call.1} parent=1 // pred_check_branch
      %13 = sbr.rel (0) target = $region5
    $region4: #{tpu_custom_call.1} parent=1 // pred_region
      %s15 = ssub.s32 16, 16
      %16 = vsyncadd [#allocation6], %s15
      %s18 = sshll.u32 %s0, 4
      %s19 = int_to_ptr.vmem [resolvable:$true] %s18
      %21 = dma.vmem_to_smem %s19, 16, [#allocation3], [#allocation6]
    $region5: #{tpu_custom_call.1} parent=1 // pred_fallthru
      _
    // Predicated region
    $region6: #{tpu_custom_call.1} parent=1 // pred_check
      _
    $region7: #{tpu_custom_call.1} parent=1 // pred_check_branch
      %23 = sbr.rel (0) target = $region9
    $region8: #{tpu_custom_call.1} parent=1 // pred_region
      _
    $region9: #{tpu_custom_call.1} parent=1 // pred_fallthru
      _
    // Predicated region
    $region10: #{tpu_custom_call.1} parent=1 // pred_check
      _
    $region11: #{tpu_custom_call.1} parent=1 // pred_check_branch
      %25 = sbr.rel (0) target = $region13
    $region12: #{tpu_custom_call.1} parent=1 // pred_region
      %s27 = ssub.s32 128, 128
      %28 = vsyncadd [#allocation4], %s27
      %s30 = sshll.u32 [#allocation7], 4
      %s31 = int_to_ptr.vmem [resolvable:$true] %s30
      %33 = dma.hbm_to_vmem [thread:$0]  %s2, 128, %s31, [#allocation4]
    $region13: #{tpu_custom_call.1} parent=1 // pred_fallthru
      _
    // Predicated region
    $region14: #{tpu_custom_call.1} parent=1 // pred_check
      _
    $region15: #{tpu_custom_call.1} parent=1 // pred_check_branch
      %35 = sbr.rel (0) target = $region17
    $region16: #{tpu_custom_call.1} parent=1 // pred_region
      %36 = dma.done [#allocation6], 16
    $region17: #{tpu_custom_call.1} parent=1 // pred_fallthru
      _
    // Predicated region
    $region18: #{tpu_custom_call.1} parent=1 // pred_check
      _
    $region19: #{tpu_custom_call.1} parent=1 // pred_check_branch
      %38 = sbr.rel (0) target = $region21
    $region20: #{tpu_custom_call.1} parent=1 // pred_region
      %39 = dma.done [#allocation4], 128
    $region21: #{tpu_custom_call.1} parent=1 // pred_fallthru
      _
    %40 = sfence
    %v41 = vld [vmem:[#allocation7] sm:$0x7f]
    %s42 = sld [smem:[#allocation3]]
    %s43 = sld [smem:[#allocation3 + $0x1]]
    %s44 = sld [smem:[#allocation2]]
    %v45 = vstv %s43
    %v46 = vmul.f32 %v45, %v41
    %v47 = vstv %s42
    %v48 = vadd.f32 %v47, %v46
    %v49 = vmul.f32 %v41, %v48
    %v50 = vstv %s44
    %v51 = vadd.f32 %v49, %v50
    %52 = vst [vmem:[#allocation8] sm:$0x7f] %v51
    // Predicated region
    $region22: #{tpu_custom_call.1} parent=1 // pred_check
      _
    $region23: #{tpu_custom_call.1} parent=1 // pred_check_branch
      %54 = sbr.rel (0) target = $region25
    $region24: #{tpu_custom_call.1} parent=1 // pred_region
      %s56 = ssub.s32 128, 128
      %57 = vsyncadd [#allocation5], %s56
      %s59 = sshll.u32 [#allocation8], 4
      %s60 = int_to_ptr.vmem [resolvable:$true] %s59
      %62 = dma.vmem_to_hbm [thread:$0]  %s60, 128, %s3, [#allocation5]
    $region25: #{tpu_custom_call.1} parent=1 // pred_fallthru
      _
    // Predicated region
    $region26: #{tpu_custom_call.1} parent=1 // pred_check
      _
    $region27: #{tpu_custom_call.1} parent=1 // pred_check_branch
      %64 = sbr.rel (0) target = $region29
    $region28: #{tpu_custom_call.1} parent=1 // pred_region
      %65 = dma.done [#allocation5], 128
    $region29: #{tpu_custom_call.1} parent=1 // pred_fallthru
      _
    %66 = vsyncpa [#allocation4], 1
    %67 = vsyncpa [#allocation5], 1
    %68 = vsyncpa [#allocation6], 1

</llo_original>
